<compile_context>
chip_gen: v7x
topology: tpu7x:2x2x1
jax: 0.10.0
libtpu: 0.0.40
codegen_flags: <defaults>
</compile_context>

<pallas_src>
import functools

import jax
import jax.numpy as jnp
from jax.experimental import pallas as pl
from jax.experimental.pallas import tpu as pltpu


_LANE = 128
_BLOCK_BYTES = 2 * 1024 * 1024     # ~2 MiB per block (v5e/v6e/v7x safe)
_MAX_LANE_CHUNKS = 32              # bounds the static unroll in the stats kernel
_MAX_BATCH_PACK = 8


# ----------------------------------------------------------------------------
# Pallas kernels (NCHW native: channels on sublanes, spatial on lanes)
# ----------------------------------------------------------------------------
def _bn_stats_kernel(x_ref, psum_ref, psq_ref, *, bk, la, n_lane_chunks):
    """Pass 1: per-batch-chunk partial per-channel sum / sum-of-squares.

    x_ref    : (bk, C, S_tile)  one batch chunk x one spatial tile
    psum_ref : (1, C, la)       lane-wide partials, resident across the inner
    psq_ref  : (1, C, la)       spatial-tile ("arbitrary") grid axis
    """
    t = pl.program_id(1)

    @pl.when(t == 0)
    def _():
        psum_ref[...] = jnp.zeros_like(psum_ref)
        psq_ref[...] = jnp.zeros_like(psq_ref)

    x = x_ref[...].astype(jnp.float32)              # (bk, C, S_tile)
    s = psum_ref[0]
    q = psq_ref[0]
    # Static lane-aligned chunking: pure VPU adds; the cross-lane reduce is
    # deferred to the tiny JAX finalize.
    for j in range(n_lane_chunks):
        c = x[:, :, j * la:(j + 1) * la]            # (bk, C, la)
        if bk == 1:
            cs = c[0]
            cq = c[0] * c[0]
        else:
            cs = jnp.sum(c, axis=0)
            cq = jnp.sum(c * c, axis=0)
        s = s + cs
        q = q + cq
    psum_ref[0] = s
    psq_ref[0] = q


def _cbn_apply_kernel(x_ref, scale_ref, shift_ref, o_ref):
    """Pass 2: out = scale * x + shift; scale/shift broadcast across lanes."""
    x = x_ref[...].astype(jnp.float32)              # (bk, C, S_tile)
    o_ref[...] = (x * scale_ref[...] + shift_ref[...]).astype(o_ref.dtype)


# ----------------------------------------------------------------------------
# Tile selection (byte-budgeted, divisor-safe)
# ----------------------------------------------------------------------------
def _pick_spatial_tile(S, C):
    """Largest multiple-of-128 divisor of S within the byte budget, else full S."""
    if S % _LANE != 0:
        # TODO(synk): odd spatial sizes use a full-extent block; add a cdiv
        # grid + remainder masking if such shapes ever become large.
        return S
    max_lanes = (_BLOCK_BYTES // (C * 4)) // _LANE * _LANE
    max_lanes = min(max(max_lanes, _LANE), _MAX_LANE_CHUNKS * _LANE)
    for cand in range(min(S, max_lanes), _LANE - 1, -_LANE):
        if S % cand == 0:
            return cand
    return _LANE  # unreachable (128 always divides S here)


def _pick_batch_pack(B, C, s_tile):
    """Pack several samples per block when spatial tiles are tiny."""
    per_sample = max(C * s_tile * 4, 1)
    max_bk = min(B, _MAX_BATCH_PACK, max(1, _BLOCK_BYTES // per_sample))
    for cand in range(max_bk, 0, -1):
        if B % cand == 0:
            return cand
    return 1


# ----------------------------------------------------------------------------
# Pallas wrappers
# ----------------------------------------------------------------------------
def bn_batch_stats_pallas(x3, eps):
    """x3: (B, C, S) -> per-channel training-mode (mean, rstd), each (C,) f32."""
    B, C, S = x3.shape
    s_tile = _pick_spatial_tile(S, C)
    bk = _pick_batch_pack(B, C, s_tile)
    la = _LANE if s_tile % _LANE == 0 else s_tile
    n_lane_chunks = s_tile // la
    nb = B // bk
    ns = S // s_tile

    psum, psq = pl.pallas_call(
        functools.partial(_bn_stats_kernel, bk=bk, la=la,
                          n_lane_chunks=n_lane_chunks),
        out_shape=(jax.ShapeDtypeStruct((nb, C, la), jnp.float32),
                   jax.ShapeDtypeStruct((nb, C, la), jnp.float32)),
        grid=(nb, ns),
        in_specs=[pl.BlockSpec((bk, C, s_tile), lambda b, t: (b, 0, t))],
        out_specs=(pl.BlockSpec((1, C, la), lambda b, t: (b, 0, 0)),
                   pl.BlockSpec((1, C, la), lambda b, t: (b, 0, 0))),
        compiler_params=pltpu.CompilerParams(
            dimension_semantics=("parallel", "arbitrary")),
    )(x3)

    # Tiny finalize in plain JAX: combine chunk/lane partials -> mean / rstd.
    n = float(B * S)
    sum_c = jnp.sum(psum, axis=(0, 2))
    sq_c = jnp.sum(psq, axis=(0, 2))
    mean = sum_c / n
    var = jnp.maximum(sq_c / n - mean * mean, 0.0)   # biased variance
    rstd = jax.lax.rsqrt(var + eps)
    return mean, rstd


def cbn_apply_pallas(x3, scale, shift):
    """x3: (B, C, S); scale/shift: (B, C) per-sample affine -> (B, C, S)."""
    B, C, S = x3.shape
    s_tile = _pick_spatial_tile(S, C)
    bk = _pick_batch_pack(B, C, s_tile)
    nb = B // bk
    ns = S // s_tile
    sc3 = scale.reshape(B, C, 1).astype(jnp.float32)
    sh3 = shift.reshape(B, C, 1).astype(jnp.float32)
    return pl.pallas_call(
        _cbn_apply_kernel,
        out_shape=jax.ShapeDtypeStruct((B, C, S), x3.dtype),
        grid=(nb, ns),
        in_specs=[pl.BlockSpec((bk, C, s_tile), lambda b, t: (b, 0, t)),
                  pl.BlockSpec((bk, C, 1), lambda b, t: (b, 0, 0)),
                  pl.BlockSpec((bk, C, 1), lambda b, t: (b, 0, 0))],
        out_specs=pl.BlockSpec((bk, C, s_tile), lambda b, t: (b, 0, t)),
        compiler_params=pltpu.CompilerParams(
            dimension_semantics=("parallel", "parallel")),
    )(x3, sc3, sh3)


# ----------------------------------------------------------------------------
# Module forward
# ----------------------------------------------------------------------------
def conditional_batchnorm2d_forward(params, x_nchw, y, eps=1e-5):
    """x_nchw: (B, C, H, W); y: integer class labels (any shape, flattened).

    Uses training-mode batch statistics (the PyTorch module's default state).
    """
    # TODO(synk): eval-mode running-statistics path not implemented (module
    # default is training mode, which this matches; running stats not emitted).
    B, C, H, W = x_nchw.shape
    y = y.reshape(-1)
    e = jnp.take(params["embed_w"], y, axis=0)       # (B, 2C) embedding gather
    gamma, beta = e[:, :C], e[:, C:]                 # .chunk(2, dim=1)

    x3 = x_nchw.reshape(B, C, H * W)                 # free reshape, no transpose
    mean, rstd = bn_batch_stats_pallas(x3, eps)      # (C,), (C,)
    scale = gamma * rstd[None, :]                    # (B, C)  fold BN + affine
    shift = beta - scale * mean[None, :]             # (B, C)
    out = cbn_apply_pallas(x3, scale, shift)
    return out.reshape(B, C, H, W)


# ----------------------------------------------------------------------------
# Deterministic parameter setup (spectral norm applied as one-time weight
# preprocessing via converged power iteration, plain JAX).
# ----------------------------------------------------------------------------
def spectral_normalize(w, n_iter=10, eps=1e-12):
    wm = w.reshape(w.shape[0], -1)
    u = jnp.full((wm.shape[0],), 1.0 / jnp.sqrt(float(wm.shape[0])), jnp.float32)
    v = None
    for _ in range(n_iter):
        v = wm.T @ u
        v = v / (jnp.linalg.norm(v) + eps)
        u = wm @ v
        u = u / (jnp.linalg.norm(u) + eps)
    sigma = jnp.dot(u, wm @ v)
    return w / sigma


def init_cbn_params(key, num_features, num_classes):
    # embed.weight[:, :C] ~ N(1, 0.02), embed.weight[:, C:] = 0, spectral norm.
    wg = 1.0 + 0.02 * jax.random.normal(key, (num_classes, num_features), jnp.float32)
    w = jnp.concatenate([wg, jnp.zeros((num_classes, num_features), jnp.float32)],
                        axis=1)
    return {"embed_w": spectral_normalize(w)}


# ----------------------------------------------------------------------------
if __name__ == "__main__":
    # Small config consistent with the module: batch=2, channels=128,
    # spatial=16x16, 10 classes.
    B, C, H, W, num_classes = 2, 128, 16, 16, 10
    key = jax.random.PRNGKey(0)
    kp, kx, ky = jax.random.split(key, 3)
    params = init_cbn_params(kp, C, num_classes)
    x = jax.random.normal(kx, (B, C, H, W), jnp.float32)
    y = jax.random.randint(ky, (B, 1), 0, num_classes)

    out = jax.jit(conditional_batchnorm2d_forward)(params, x, y)
    out = jax.block_until_ready(out)
    assert out.shape == (B, C, H, W), out.shape
    assert bool(jnp.all(jnp.isfinite(out)))

    # Plain-JAX reference (training-mode BN + per-sample affine).
    e = jnp.take(params["embed_w"], y.reshape(-1), axis=0)
    g_ref, b_ref = e[:, :C], e[:, C:]
    mu = jnp.mean(x, axis=(0, 2, 3), keepdims=True)
    var = jnp.mean((x - mu) ** 2, axis=(0, 2, 3), keepdims=True)
    ref = (g_ref[:, :, None, None] * ((x - mu) * jax.lax.rsqrt(var + 1e-5))
           + b_ref[:, :, None, None])
    max_err = float(jnp.max(jnp.abs(out - ref)))
    assert max_err < 5e-4, max_err

    print("KERNEL_OK")
</pallas_src>

<mosaic_0001>
module attributes {stable_mosaic.version = 11 : i64} {
  func.func @_bn_stats_kernel(%arg0: i32, %arg1: i32, %arg2: memref<2x128x256xf32, #tpu.memory_space<vmem>>, %arg3: memref<1x128x128xf32, #tpu.memory_space<vmem>>, %arg4: memref<1x128x128xf32, #tpu.memory_space<vmem>>) attributes {dimension_semantics = [#tpu.dimension_semantics<parallel>, #tpu.dimension_semantics<arbitrary>], iteration_bounds = array<i64: 1, 1>, scalar_prefetch = 0 : i64, scratch_operands = 0 : i64, tpu.core_type = #tpu.core_type<tc>, window_params = [{transform_indices = @transform_0, window_bounds = array<i64: 2, 128, 256>}, {transform_indices = @transform_1, window_bounds = array<i64: 1, 128, 128>}, {transform_indices = @transform_2, window_bounds = array<i64: 1, 128, 128>}]} {
    %c0_i32 = arith.constant 0 : i32
    %0 = arith.cmpi eq, %arg1, %c0_i32 : i32
    %1 = arith.extui %0 : i1 to i32
    %c0_i32_0 = arith.constant 0 : i32
    %2 = arith.cmpi ne, %1, %c0_i32_0 : i32
    scf.if %2 {
      %cst_18 = arith.constant 0.000000e+00 : f32
      %26 = vector.broadcast %cst_18 : f32 to vector<1x128x128xf32>
      %c0_19 = arith.constant 0 : index
      %c0_20 = arith.constant 0 : index
      %c0_21 = arith.constant 0 : index
      %27 = vector.load %arg3[%c0_19, %c0_20, %c0_21] : memref<1x128x128xf32, #tpu.memory_space<vmem>>, vector<1x128x128xf32>
      tpu.vector_store %arg3[%c0_19, %c0_20, %c0_21], %26 {strides = array<i32>} : memref<1x128x128xf32, #tpu.memory_space<vmem>>, vector<1x128x128xf32>,
      %cst_22 = arith.constant 0.000000e+00 : f32
      %28 = vector.broadcast %cst_22 : f32 to vector<1x128x128xf32>
      %c0_23 = arith.constant 0 : index
      %c0_24 = arith.constant 0 : index
      %c0_25 = arith.constant 0 : index
      %29 = vector.load %arg4[%c0_23, %c0_24, %c0_25] : memref<1x128x128xf32, #tpu.memory_space<vmem>>, vector<1x128x128xf32>
      tpu.vector_store %arg4[%c0_23, %c0_24, %c0_25], %28 {strides = array<i32>} : memref<1x128x128xf32, #tpu.memory_space<vmem>>, vector<1x128x128xf32>,
    } else {
    }
    %c0 = arith.constant 0 : index
    %c0_1 = arith.constant 0 : index
    %c0_2 = arith.constant 0 : index
    %3 = vector.load %arg2[%c0, %c0_1, %c0_2] : memref<2x128x256xf32, #tpu.memory_space<vmem>>, vector<2x128x256xf32>
    %c0_3 = arith.constant 0 : index
    %c0_4 = arith.constant 0 : index
    %c0_5 = arith.constant 0 : index
    %4 = vector.load %arg3[%c0_3, %c0_4, %c0_5] : memref<1x128x128xf32, #tpu.memory_space<vmem>>, vector<1x128x128xf32>
    %5 = vector.shape_cast %4 : vector<1x128x128xf32> to vector<128x128xf32>
    %c0_6 = arith.constant 0 : index
    %c0_7 = arith.constant 0 : index
    %c0_8 = arith.constant 0 : index
    %6 = vector.load %arg4[%c0_6, %c0_7, %c0_8] : memref<1x128x128xf32, #tpu.memory_space<vmem>>, vector<1x128x128xf32>
    %7 = vector.shape_cast %6 : vector<1x128x128xf32> to vector<128x128xf32>
    %8 = vector.extract_strided_slice %3 {offsets = [0, 0, 0], sizes = [2, 128, 128], strides = [1, 1, 1]} : vector<2x128x256xf32> to vector<2x128x128xf32>
    %cst = arith.constant dense<0.000000e+00> : vector<128x128xf32>
    %9 = vector.multi_reduction <add>, %8, %cst [0] : vector<2x128x128xf32> to vector<128x128xf32>
    %10 = arith.mulf %8, %8 : vector<2x128x128xf32>
    %cst_9 = arith.constant dense<0.000000e+00> : vector<128x128xf32>
    %11 = vector.multi_reduction <add>, %10, %cst_9 [0] : vector<2x128x128xf32> to vector<128x128xf32>
    %12 = arith.addf %5, %9 : vector<128x128xf32>
    %13 = arith.addf %7, %11 : vector<128x128xf32>
    %14 = vector.extract_strided_slice %3 {offsets = [0, 0, 128], sizes = [2, 128, 128], strides = [1, 1, 1]} : vector<2x128x256xf32> to vector<2x128x128xf32>
    %cst_10 = arith.constant dense<0.000000e+00> : vector<128x128xf32>
    %15 = vector.multi_reduction <add>, %14, %cst_10 [0] : vector<2x128x128xf32> to vector<128x128xf32>
    %16 = arith.mulf %14, %14 : vector<2x128x128xf32>
    %cst_11 = arith.constant dense<0.000000e+00> : vector<128x128xf32>
    %17 = vector.multi_reduction <add>, %16, %cst_11 [0] : vector<2x128x128xf32> to vector<128x128xf32>
    %18 = arith.addf %12, %15 : vector<128x128xf32>
    %19 = arith.addf %13, %17 : vector<128x128xf32>
    %c0_12 = arith.constant 0 : index
    %c0_13 = arith.constant 0 : index
    %c0_14 = arith.constant 0 : index
    %20 = vector.load %arg3[%c0_12, %c0_13, %c0_14] : memref<1x128x128xf32, #tpu.memory_space<vmem>>, vector<1x128x128xf32>
    %21 = vector.shape_cast %20 : vector<1x128x128xf32> to vector<128x128xf32>
    %22 = vector.shape_cast %18 : vector<128x128xf32> to vector<1x128x128xf32>
    tpu.vector_store %arg3[%c0_12, %c0_13, %c0_14], %22 {strides = array<i32>} : memref<1x128x128xf32, #tpu.memory_space<vmem>>, vector<1x128x128xf32>,
    %c0_15 = arith.constant 0 : index
    %c0_16 = arith.constant 0 : index
    %c0_17 = arith.constant 0 : index
    %23 = vector.load %arg4[%c0_15, %c0_16, %c0_17] : memref<1x128x128xf32, #tpu.memory_space<vmem>>, vector<1x128x128xf32>
    %24 = vector.shape_cast %23 : vector<1x128x128xf32> to vector<128x128xf32>
    %25 = vector.shape_cast %19 : vector<128x128xf32> to vector<1x128x128xf32>
    tpu.vector_store %arg4[%c0_15, %c0_16, %c0_17], %25 {strides = array<i32>} : memref<1x128x128xf32, #tpu.memory_space<vmem>>, vector<1x128x128xf32>,
    return
  }
  func.func @transform_0(%arg0: i32, %arg1: i32) -> (i32, i32, i32) {
    %c0_i32 = arith.constant 0 : i32
    %c0_i32_0 = arith.constant 0 : i32
    return %arg0, %c0_i32, %arg1 : i32, i32, i32
  }
  func.func @transform_1(%arg0: i32, %arg1: i32) -> (i32, i32, i32) {
    %c0_i32 = arith.constant 0 : i32
    %c0_i32_0 = arith.constant 0 : i32
    %c0_i32_1 = arith.constant 0 : i32
    return %arg0, %c0_i32, %c0_i32_0 : i32, i32, i32
  }
  func.func @transform_2(%arg0: i32, %arg1: i32) -> (i32, i32, i32) {
    %c0_i32 = arith.constant 0 : i32
    %c0_i32_0 = arith.constant 0 : i32
    %c0_i32_1 = arith.constant 0 : i32
    return %arg0, %c0_i32, %c0_i32_0 : i32, i32, i32
  }
}

module attributes {stable_mosaic.version = 11 : i64} {
  func.func @_cbn_apply_kernel(%arg0: i32, %arg1: i32, %arg2: memref<2x128x256xf32, #tpu.memory_space<vmem>>, %arg3: memref<2x128x1xf32, #tpu.memory_space<vmem>>, %arg4: memref<2x128x1xf32, #tpu.memory_space<vmem>>, %arg5: memref<2x128x256xf32, #tpu.memory_space<vmem>>) attributes {dimension_semantics = [#tpu.dimension_semantics<parallel>, #tpu.dimension_semantics<parallel>], iteration_bounds = array<i64: 1, 1>, scalar_prefetch = 0 : i64, scratch_operands = 0 : i64, tpu.core_type = #tpu.core_type<tc>, window_params = [{transform_indices = @transform_0, window_bounds = array<i64: 2, 128, 256>}, {transform_indices = @transform_1, window_bounds = array<i64: 2, 128, 1>}, {transform_indices = @transform_2, window_bounds = array<i64: 2, 128, 1>}, {transform_indices = @transform_3, window_bounds = array<i64: 2, 128, 256>}]} {
    %c0 = arith.constant 0 : index
    %c0_0 = arith.constant 0 : index
    %c0_1 = arith.constant 0 : index
    %0 = vector.load %arg2[%c0, %c0_0, %c0_1] : memref<2x128x256xf32, #tpu.memory_space<vmem>>, vector<2x128x256xf32>
    %c0_2 = arith.constant 0 : index
    %c0_3 = arith.constant 0 : index
    %c0_4 = arith.constant 0 : index
    %1 = vector.load %arg3[%c0_2, %c0_3, %c0_4] : memref<2x128x1xf32, #tpu.memory_space<vmem>>, vector<2x128x1xf32>
    %2 = vector.broadcast %1 : vector<2x128x1xf32> to vector<2x128x256xf32>
    %3 = arith.mulf %0, %2 : vector<2x128x256xf32>
    %c0_5 = arith.constant 0 : index
    %c0_6 = arith.constant 0 : index
    %c0_7 = arith.constant 0 : index
    %4 = vector.load %arg4[%c0_5, %c0_6, %c0_7] : memref<2x128x1xf32, #tpu.memory_space<vmem>>, vector<2x128x1xf32>
    %5 = vector.broadcast %4 : vector<2x128x1xf32> to vector<2x128x256xf32>
    %6 = arith.addf %3, %5 : vector<2x128x256xf32>
    %c0_8 = arith.constant 0 : index
    %c0_9 = arith.constant 0 : index
    %c0_10 = arith.constant 0 : index
    %7 = vector.load %arg5[%c0_8, %c0_9, %c0_10] : memref<2x128x256xf32, #tpu.memory_space<vmem>>, vector<2x128x256xf32>
    tpu.vector_store %arg5[%c0_8, %c0_9, %c0_10], %6 {strides = array<i32>} : memref<2x128x256xf32, #tpu.memory_space<vmem>>, vector<2x128x256xf32>,
    return
  }
  func.func @transform_0(%arg0: i32, %arg1: i32) -> (i32, i32, i32) {
    %c0_i32 = arith.constant 0 : i32
    %c0_i32_0 = arith.constant 0 : i32
    return %arg0, %c0_i32, %arg1 : i32, i32, i32
  }
  func.func @transform_1(%arg0: i32, %arg1: i32) -> (i32, i32, i32) {
    %c0_i32 = arith.constant 0 : i32
    %c0_i32_0 = arith.constant 0 : i32
    %c0_i32_1 = arith.constant 0 : i32
    return %arg0, %c0_i32, %c0_i32_0 : i32, i32, i32
  }
  func.func @transform_2(%arg0: i32, %arg1: i32) -> (i32, i32, i32) {
    %c0_i32 = arith.constant 0 : i32
    %c0_i32_0 = arith.constant 0 : i32
    %c0_i32_1 = arith.constant 0 : i32
    return %arg0, %c0_i32, %c0_i32_0 : i32, i32, i32
  }
  func.func @transform_3(%arg0: i32, %arg1: i32) -> (i32, i32, i32) {
    %c0_i32 = arith.constant 0 : i32
    %c0_i32_0 = arith.constant 0 : i32
    return %arg0, %c0_i32, %arg1 : i32, i32, i32
  }
}

</mosaic_0001>

<llo_original>
// kernel: conditional_batchnorm2d_forward.2
$region0: #{conditional_batchnorm2d_forward.2}
  #allocation0 [shape = 'u32[]', space=smem, size = 0x4, offset = 0x4, fixed_abs, tag = 'smem constant byte address 0x4 - core index']
  #allocation1 [shape = 'u32[144,128]{1,0:T(1,128)}', space=vmem, size = 0x12000, scoped, tag = 'internal scratch']
  %s0 = inlined_call_operand.vmem [shape: f32[2,128,256], index: 0, kind: input, shape index: {}]
  %s1 = inlined_call_operand.vmem [shape: f32[1,128,128], index: 1, kind: output, shape index: {0}]
  %s2 = inlined_call_operand.vmem [shape: f32[1,128,128], index: 2, kind: output, shape index: {1}]
  %3 = xla_tuple %s1, %s2
  %s4 = sld [smem:[#allocation0]]
  $region26: #{conditional_batchnorm2d_forward.2} parent=0
    _
  %s6 = ssub.s32 1, %s4
  %s7 = scalar_select 0, %s6, %s4
  // Predicated region
  $region2: #{conditional_batchnorm2d_forward.2} parent=0 // pred_check
    _
  $region3: #{conditional_batchnorm2d_forward.2} parent=0 // pred_check_branch
    %9 = sbr.rel (0) target = $region5
  $region4: #{conditional_batchnorm2d_forward.2} parent=0 // pred_region
    _
  $region5: #{conditional_batchnorm2d_forward.2} parent=0 // pred_fallthru
    _
  %p10 = scmp.eq.s32.totalorder 0, 0
  // Predicated region
  $region6: #{conditional_batchnorm2d_forward.2} parent=0 // pred_check
    %p11 = pneg %p10
  $region7: #{conditional_batchnorm2d_forward.2} parent=0 // pred_check_branch
    %13 = sbr.rel (%p11) target = $region9
  $region8: #{conditional_batchnorm2d_forward.2} parent=0 // pred_region
    %14 = vst [vmem:[%s1] sm:$0xff] 0.0
    %15 = vst [vmem:[%s1 + $0x8] sm:$0xff] 0.0
    %16 = vst [vmem:[%s1 + $0x10] sm:$0xff] 0.0
    %17 = vst [vmem:[%s1 + $0x18] sm:$0xff] 0.0
    %18 = vst [vmem:[%s1 + $0x20] sm:$0xff] 0.0
    %19 = vst [vmem:[%s1 + $0x28] sm:$0xff] 0.0
    %20 = vst [vmem:[%s1 + $0x30] sm:$0xff] 0.0
    %21 = vst [vmem:[%s1 + $0x38] sm:$0xff] 0.0
    %22 = vst [vmem:[%s1 + $0x40] sm:$0xff] 0.0
    %23 = vst [vmem:[%s1 + $0x48] sm:$0xff] 0.0
    %24 = vst [vmem:[%s1 + $0x50] sm:$0xff] 0.0
    %25 = vst [vmem:[%s1 + $0x58] sm:$0xff] 0.0
    %26 = vst [vmem:[%s1 + $0x60] sm:$0xff] 0.0
    %27 = vst [vmem:[%s1 + $0x68] sm:$0xff] 0.0
    %28 = vst [vmem:[%s1 + $0x70] sm:$0xff] 0.0
    %29 = vst [vmem:[%s1 + $0x78] sm:$0xff] 0.0
    %30 = vst [vmem:[%s2] sm:$0xff] 0.0
    %31 = vst [vmem:[%s2 + $0x8] sm:$0xff] 0.0
    %32 = vst [vmem:[%s2 + $0x10] sm:$0xff] 0.0
    %33 = vst [vmem:[%s2 + $0x18] sm:$0xff] 0.0
    %34 = vst [vmem:[%s2 + $0x20] sm:$0xff] 0.0
    %35 = vst [vmem:[%s2 + $0x28] sm:$0xff] 0.0
    %36 = vst [vmem:[%s2 + $0x30] sm:$0xff] 0.0
    %37 = vst [vmem:[%s2 + $0x38] sm:$0xff] 0.0
    %38 = vst [vmem:[%s2 + $0x40] sm:$0xff] 0.0
    %39 = vst [vmem:[%s2 + $0x48] sm:$0xff] 0.0
    %40 = vst [vmem:[%s2 + $0x50] sm:$0xff] 0.0
    %41 = vst [vmem:[%s2 + $0x58] sm:$0xff] 0.0
    %42 = vst [vmem:[%s2 + $0x60] sm:$0xff] 0.0
    %43 = vst [vmem:[%s2 + $0x68] sm:$0xff] 0.0
    %44 = vst [vmem:[%s2 + $0x70] sm:$0xff] 0.0
    %45 = vst [vmem:[%s2 + $0x78] sm:$0xff] 0.0
  $region9: #{conditional_batchnorm2d_forward.2} parent=0 // pred_fallthru
    _
  %v46 = vld [vmem:[%s0] sm:$0xff]
  %v47 = vld [vmem:[%s0 + $0x8] sm:$0xff]
  %v48 = vld [vmem:[%s0 + $0x10] sm:$0xff]
  %v49 = vld [vmem:[%s0 + $0x18] sm:$0xff]
  %v50 = vld [vmem:[%s0 + $0x20] sm:$0xff]
  %v51 = vld [vmem:[%s0 + $0x28] sm:$0xff]
  %v52 = vld [vmem:[%s0 + $0x30] sm:$0xff]
  %v53 = vld [vmem:[%s0 + $0x38] sm:$0xff]
  %v54 = vld [vmem:[%s0 + $0x40] sm:$0xff]
  %v55 = vld [vmem:[%s0 + $0x48] sm:$0xff]
  %v56 = vld [vmem:[%s0 + $0x50] sm:$0xff]
  %v57 = vld [vmem:[%s0 + $0x58] sm:$0xff]
  %v58 = vld [vmem:[%s0 + $0x60] sm:$0xff]
  %v59 = vld [vmem:[%s0 + $0x68] sm:$0xff]
  %v60 = vld [vmem:[%s0 + $0x70] sm:$0xff]
  %v61 = vld [vmem:[%s0 + $0x78] sm:$0xff]
  %v62 = vld [vmem:[%s0 + $0x80] sm:$0xff]
  %v63 = vld [vmem:[%s0 + $0x88] sm:$0xff]
  %v64 = vld [vmem:[%s0 + $0x90] sm:$0xff]
  %v65 = vld [vmem:[%s0 + $0x98] sm:$0xff]
  %v66 = vld [vmem:[%s0 + $0xa0] sm:$0xff]
  %v67 = vld [vmem:[%s0 + $0xa8] sm:$0xff]
  %v68 = vld [vmem:[%s0 + $0xb0] sm:$0xff]
  %v69 = vld [vmem:[%s0 + $0xb8] sm:$0xff]
  %v70 = vld [vmem:[%s0 + $0xc0] sm:$0xff]
  %v71 = vld [vmem:[%s0 + $0xc8] sm:$0xff]
  %v72 = vld [vmem:[%s0 + $0xd0] sm:$0xff]
  %v73 = vld [vmem:[%s0 + $0xd8] sm:$0xff]
  %v74 = vld [vmem:[%s0 + $0xe0] sm:$0xff]
  %v75 = vld [vmem:[%s0 + $0xe8] sm:$0xff]
  %v76 = vld [vmem:[%s0 + $0xf0] sm:$0xff]
  %v77 = vld [vmem:[%s0 + $0xf8] sm:$0xff]
  %v78 = vld [vmem:[%s0 + $0x100] sm:$0xff]
  %v79 = vld [vmem:[%s0 + $0x108] sm:$0xff]
  %v80 = vld [vmem:[%s0 + $0x110] sm:$0xff]
  %v81 = vld [vmem:[%s0 + $0x118] sm:$0xff]
  %v82 = vld [vmem:[%s0 + $0x120] sm:$0xff]
  %v83 = vld [vmem:[%s0 + $0x128] sm:$0xff]
  %v84 = vld [vmem:[%s0 + $0x130] sm:$0xff]
  %v85 = vld [vmem:[%s0 + $0x138] sm:$0xff]
  %v86 = vld [vmem:[%s0 + $0x140] sm:$0xff]
  %v87 = vld [vmem:[%s0 + $0x148] sm:$0xff]
  %v88 = vld [vmem:[%s0 + $0x150] sm:$0xff]
  %v89 = vld [vmem:[%s0 + $0x158] sm:$0xff]
  %v90 = vld [vmem:[%s0 + $0x160] sm:$0xff]
  %v91 = vld [vmem:[%s0 + $0x168] sm:$0xff]
  %v92 = vld [vmem:[%s0 + $0x170] sm:$0xff]
  %v93 = vld [vmem:[%s0 + $0x178] sm:$0xff]
  %v94 = vld [vmem:[%s0 + $0x180] sm:$0xff]
  %v95 = vld [vmem:[%s0 + $0x188] sm:$0xff]
  %v96 = vld [vmem:[%s0 + $0x190] sm:$0xff]
  %v97 = vld [vmem:[%s0 + $0x198] sm:$0xff]
  %v98 = vld [vmem:[%s0 + $0x1a0] sm:$0xff]
  %v99 = vld [vmem:[%s0 + $0x1a8] sm:$0xff]
  %v100 = vld [vmem:[%s0 + $0x1b0] sm:$0xff]
  %v101 = vld [vmem:[%s0 + $0x1b8] sm:$0xff]
  %v102 = vld [vmem:[%s0 + $0x1c0] sm:$0xff]
  %v103 = vld [vmem:[%s0 + $0x1c8] sm:$0xff]
  %v104 = vld [vmem:[%s0 + $0x1d0] sm:$0xff]
  %v105 = vld [vmem:[%s0 + $0x1d8] sm:$0xff]
  %v106 = vld [vmem:[%s0 + $0x1e0] sm:$0xff]
  %v107 = vld [vmem:[%s0 + $0x1e8] sm:$0xff]
  %v108 = vld [vmem:[%s0 + $0x1f0] sm:$0xff]
  %v109 = vld [vmem:[%s0 + $0x1f8] sm:$0xff]
  %v110 = vld [vmem:[%s1] sm:$0xff]
  %v111 = vld [vmem:[%s1 + $0x8] sm:$0xff]
  %v112 = vld [vmem:[%s1 + $0x10] sm:$0xff]
  %v113 = vld [vmem:[%s1 + $0x18] sm:$0xff]
  %v114 = vld [vmem:[%s1 + $0x20] sm:$0xff]
  %v115 = vld [vmem:[%s1 + $0x28] sm:$0xff]
  %v116 = vld [vmem:[%s1 + $0x30] sm:$0xff]
  %v117 = vld [vmem:[%s1 + $0x38] sm:$0xff]
  %v118 = vld [vmem:[%s1 + $0x40] sm:$0xff]
  %v119 = vld [vmem:[%s1 + $0x48] sm:$0xff]
  %v120 = vld [vmem:[%s1 + $0x50] sm:$0xff]
  %v121 = vld [vmem:[%s1 + $0x58] sm:$0xff]
  %v122 = vld [vmem:[%s1 + $0x60] sm:$0xff]
  %v123 = vld [vmem:[%s1 + $0x68] sm:$0xff]
  %v124 = vld [vmem:[%s1 + $0x70] sm:$0xff]
  %v125 = vld [vmem:[%s1 + $0x78] sm:$0xff]
  %v126 = vld [vmem:[%s2] sm:$0xff]
  %v127 = vld [vmem:[%s2 + $0x8] sm:$0xff]
  %v128 = vld [vmem:[%s2 + $0x10] sm:$0xff]
  %v129 = vld [vmem:[%s2 + $0x18] sm:$0xff]
  %v130 = vld [vmem:[%s2 + $0x20] sm:$0xff]
  %v131 = vld [vmem:[%s2 + $0x28] sm:$0xff]
  %v132 = vld [vmem:[%s2 + $0x30] sm:$0xff]
  %v133 = vld [vmem:[%s2 + $0x38] sm:$0xff]
  %v134 = vld [vmem:[%s2 + $0x40] sm:$0xff]
  %v135 = vld [vmem:[%s2 + $0x48] sm:$0xff]
  %v136 = vld [vmem:[%s2 + $0x50] sm:$0xff]
  %v137 = vld [vmem:[%s2 + $0x58] sm:$0xff]
  %v138 = vld [vmem:[%s2 + $0x60] sm:$0xff]
  %v139 = vld [vmem:[%s2 + $0x68] sm:$0xff]
  %v140 = vld [vmem:[%s2 + $0x70] sm:$0xff]
  %v141 = vld [vmem:[%s2 + $0x78] sm:$0xff]
  %v142 = vadd.f32 %v46, %v78
  %v143 = vadd.f32 %v48, %v80
  %v144 = vadd.f32 %v50, %v82
  %v145 = vadd.f32 %v52, %v84
  %v146 = vadd.f32 %v54, %v86
  %v147 = vadd.f32 %v56, %v88
  %v148 = vadd.f32 %v58, %v90
  %v149 = vadd.f32 %v60, %v92
  %v150 = vadd.f32 %v62, %v94
  %v151 = vadd.f32 %v64, %v96
  %v152 = vadd.f32 %v66, %v98
  %v153 = vadd.f32 %v68, %v100
  %v154 = vadd.f32 %v70, %v102
  %v155 = vadd.f32 %v72, %v104
  %v156 = vadd.f32 %v74, %v106
  %v157 = vadd.f32 %v76, %v108
  %v158 = vmul.f32 %v46, %v46
  %v159 = vmul.f32 %v48, %v48
  %v160 = vmul.f32 %v50, %v50
  %v161 = vmul.f32 %v52, %v52
  %v162 = vmul.f32 %v54, %v54
  %v163 = vmul.f32 %v56, %v56
  %v164 = vmul.f32 %v58, %v58
  %v165 = vmul.f32 %v60, %v60
  %v166 = vmul.f32 %v62, %v62
  %v167 = vmul.f32 %v64, %v64
  %v168 = vmul.f32 %v66, %v66
  %v169 = vmul.f32 %v68, %v68
  %v170 = vmul.f32 %v70, %v70
  %v171 = vmul.f32 %v72, %v72
  %v172 = vmul.f32 %v74, %v74
  %v173 = vmul.f32 %v76, %v76
  %v174 = vmul.f32 %v78, %v78
  %v175 = vmul.f32 %v80, %v80
  %v176 = vmul.f32 %v82, %v82
  %v177 = vmul.f32 %v84, %v84
  %v178 = vmul.f32 %v86, %v86
  %v179 = vmul.f32 %v88, %v88
  %v180 = vmul.f32 %v90, %v90
  %v181 = vmul.f32 %v92, %v92
  %v182 = vmul.f32 %v94, %v94
  %v183 = vmul.f32 %v96, %v96
  %v184 = vmul.f32 %v98, %v98
  %v185 = vmul.f32 %v100, %v100
  %v186 = vmul.f32 %v102, %v102
  %v187 = vmul.f32 %v104, %v104
  %v188 = vmul.f32 %v106, %v106
  %v189 = vmul.f32 %v108, %v108
  %v190 = vadd.f32 %v158, %v174
  %v191 = vadd.f32 %v159, %v175
  %v192 = vadd.f32 %v160, %v176
  %v193 = vadd.f32 %v161, %v177
  %v194 = vadd.f32 %v162, %v178
  %v195 = vadd.f32 %v163, %v179
  %v196 = vadd.f32 %v164, %v180
  %v197 = vadd.f32 %v165, %v181
  %v198 = vadd.f32 %v166, %v182
  %v199 = vadd.f32 %v167, %v183
  %v200 = vadd.f32 %v168, %v184
  %v201 = vadd.f32 %v169, %v185
  %v202 = vadd.f32 %v170, %v186
  %v203 = vadd.f32 %v171, %v187
  %v204 = vadd.f32 %v172, %v188
  %v205 = vadd.f32 %v173, %v189
  %v206 = vadd.f32 %v110, %v142
  %v207 = vadd.f32 %v111, %v143
  %v208 = vadd.f32 %v112, %v144
  %v209 = vadd.f32 %v113, %v145
  %v210 = vadd.f32 %v114, %v146
  %v211 = vadd.f32 %v115, %v147
  %v212 = vadd.f32 %v116, %v148
  %v213 = vadd.f32 %v117, %v149
  %v214 = vadd.f32 %v118, %v150
  %v215 = vadd.f32 %v119, %v151
  %v216 = vadd.f32 %v120, %v152
  %v217 = vadd.f32 %v121, %v153
  %v218 = vadd.f32 %v122, %v154
  %v219 = vadd.f32 %v123, %v155
  %v220 = vadd.f32 %v124, %v156
  %v221 = vadd.f32 %v125, %v157
  %v222 = vadd.f32 %v126, %v190
  %v223 = vadd.f32 %v127, %v191
  %v224 = vadd.f32 %v128, %v192
  %v225 = vadd.f32 %v129, %v193
  %v226 = vadd.f32 %v130, %v194
  %v227 = vadd.f32 %v131, %v195
  %v228 = vadd.f32 %v132, %v196
  %v229 = vadd.f32 %v133, %v197
  %v230 = vadd.f32 %v134, %v198
  %v231 = vadd.f32 %v135, %v199
  %v232 = vadd.f32 %v136, %v200
  %v233 = vadd.f32 %v137, %v201
  %v234 = vadd.f32 %v138, %v202
  %v235 = vadd.f32 %v139, %v203
  %v236 = vadd.f32 %v140, %v204
  %v237 = vadd.f32 %v141, %v205
  %v238 = vadd.f32 %v47, %v79
  %v239 = vadd.f32 %v49, %v81
  %v240 = vadd.f32 %v51, %v83
  %v241 = vadd.f32 %v53, %v85
  %v242 = vadd.f32 %v55, %v87
  %v243 = vadd.f32 %v57, %v89
  %v244 = vadd.f32 %v59, %v91
  %v245 = vadd.f32 %v61, %v93
  %v246 = vadd.f32 %v63, %v95
  %v247 = vadd.f32 %v65, %v97
  %v248 = vadd.f32 %v67, %v99
  %v249 = vadd.f32 %v69, %v101
  %v250 = vadd.f32 %v71, %v103
  %v251 = vadd.f32 %v73, %v105
  %v252 = vadd.f32 %v75, %v107
  %v253 = vadd.f32 %v77, %v109
  %v254 = vmul.f32 %v47, %v47
  %v255 = vmul.f32 %v49, %v49
  %v256 = vmul.f32 %v51, %v51
  %v257 = vmul.f32 %v53, %v53
  %v258 = vmul.f32 %v55, %v55
  %v259 = vmul.f32 %v57, %v57
  %v260 = vmul.f32 %v59, %v59
  %v261 = vmul.f32 %v61, %v61
  %v262 = vmul.f32 %v63, %v63
  %v263 = vmul.f32 %v65, %v65
  %v264 = vmul.f32 %v67, %v67
  %v265 = vmul.f32 %v69, %v69
  %v266 = vmul.f32 %v71, %v71
  %v267 = vmul.f32 %v73, %v73
  %v268 = vmul.f32 %v75, %v75
  %v269 = vmul.f32 %v77, %v77
  %v270 = vmul.f32 %v79, %v79
  %v271 = vmul.f32 %v81, %v81
  %v272 = vmul.f32 %v83, %v83
  %v273 = vmul.f32 %v85, %v85
  %v274 = vmul.f32 %v87, %v87
  %v275 = vmul.f32 %v89, %v89
  %v276 = vmul.f32 %v91, %v91
  %v277 = vmul.f32 %v93, %v93
  %v278 = vmul.f32 %v95, %v95
  %v279 = vmul.f32 %v97, %v97
  %v280 = vmul.f32 %v99, %v99
  %v281 = vmul.f32 %v101, %v101
  %v282 = vmul.f32 %v103, %v103
  %v283 = vmul.f32 %v105, %v105
  %v284 = vmul.f32 %v107, %v107
  %v285 = vmul.f32 %v109, %v109
  %v286 = vadd.f32 %v254, %v270
  %v287 = vadd.f32 %v255, %v271
  %v288 = vadd.f32 %v256, %v272
  %v289 = vadd.f32 %v257, %v273
  %v290 = vadd.f32 %v258, %v274
  %v291 = vadd.f32 %v259, %v275
  %v292 = vadd.f32 %v260, %v276
  %v293 = vadd.f32 %v261, %v277
  %v294 = vadd.f32 %v262, %v278
  %v295 = vadd.f32 %v263, %v279
  %v296 = vadd.f32 %v264, %v280
  %v297 = vadd.f32 %v265, %v281
  %v298 = vadd.f32 %v266, %v282
  %v299 = vadd.f32 %v267, %v283
  %v300 = vadd.f32 %v268, %v284
  %v301 = vadd.f32 %v269, %v285
  %v302 = vadd.f32 %v206, %v238
  %v303 = vadd.f32 %v207, %v239
  %v304 = vadd.f32 %v208, %v240
  %v305 = vadd.f32 %v209, %v241
  %v306 = vadd.f32 %v210, %v242
  %v307 = vadd.f32 %v211, %v243
  %v308 = vadd.f32 %v212, %v244
  %v309 = vadd.f32 %v213, %v245
  %v310 = vadd.f32 %v214, %v246
  %v311 = vadd.f32 %v215, %v247
  %v312 = vadd.f32 %v216, %v248
  %v313 = vadd.f32 %v217, %v249
  %v314 = vadd.f32 %v218, %v250
  %v315 = vadd.f32 %v219, %v251
  %v316 = vadd.f32 %v220, %v252
  %v317 = vadd.f32 %v221, %v253
  %v318 = vadd.f32 %v222, %v286
  %v319 = vadd.f32 %v223, %v287
  %v320 = vadd.f32 %v224, %v288
  %v321 = vadd.f32 %v225, %v289
  %v322 = vadd.f32 %v226, %v290
  %v323 = vadd.f32 %v227, %v291
  %v324 = vadd.f32 %v228, %v292
  %v325 = vadd.f32 %v229, %v293
  %v326 = vadd.f32 %v230, %v294
  %v327 = vadd.f32 %v231, %v295
  %v328 = vadd.f32 %v232, %v296
  %v329 = vadd.f32 %v233, %v297
  %v330 = vadd.f32 %v234, %v298
  %v331 = vadd.f32 %v235, %v299
  %v332 = vadd.f32 %v236, %v300
  %v333 = vadd.f32 %v237, %v301
  %334 = vst [vmem:[%s1] sm:$0xff] %v302
  %335 = vst [vmem:[%s1 + $0x8] sm:$0xff] %v303
  %336 = vst [vmem:[%s1 + $0x10] sm:$0xff] %v304
  %337 = vst [vmem:[%s1 + $0x18] sm:$0xff] %v305
  %338 = vst [vmem:[%s1 + $0x20] sm:$0xff] %v306
  %339 = vst [vmem:[%s1 + $0x28] sm:$0xff] %v307
  %340 = vst [vmem:[%s1 + $0x30] sm:$0xff] %v308
  %341 = vst [vmem:[%s1 + $0x38] sm:$0xff] %v309
  %342 = vst [vmem:[%s1 + $0x40] sm:$0xff] %v310
  %343 = vst [vmem:[%s1 + $0x48] sm:$0xff] %v311
  %344 = vst [vmem:[%s1 + $0x50] sm:$0xff] %v312
  %345 = vst [vmem:[%s1 + $0x58] sm:$0xff] %v313
  %346 = vst [vmem:[%s1 + $0x60] sm:$0xff] %v314
  %347 = vst [vmem:[%s1 + $0x68] sm:$0xff] %v315
  %348 = vst [vmem:[%s1 + $0x70] sm:$0xff] %v316
  %349 = vst [vmem:[%s1 + $0x78] sm:$0xff] %v317
  %350 = vst [vmem:[%s2] sm:$0xff] %v318
  %351 = vst [vmem:[%s2 + $0x8] sm:$0xff] %v319
  %352 = vst [vmem:[%s2 + $0x10] sm:$0xff] %v320
  %353 = vst [vmem:[%s2 + $0x18] sm:$0xff] %v321
  %354 = vst [vmem:[%s2 + $0x20] sm:$0xff] %v322
  %355 = vst [vmem:[%s2 + $0x28] sm:$0xff] %v323
  %356 = vst [vmem:[%s2 + $0x30] sm:$0xff] %v324
  %357 = vst [vmem:[%s2 + $0x38] sm:$0xff] %v325
  %358 = vst [vmem:[%s2 + $0x40] sm:$0xff] %v326
  %359 = vst [vmem:[%s2 + $0x48] sm:$0xff] %v327
  %360 = vst [vmem:[%s2 + $0x50] sm:$0xff] %v328
  %361 = vst [vmem:[%s2 + $0x58] sm:$0xff] %v329
  %362 = vst [vmem:[%s2 + $0x60] sm:$0xff] %v330
  %363 = vst [vmem:[%s2 + $0x68] sm:$0xff] %v331
  %364 = vst [vmem:[%s2 + $0x70] sm:$0xff] %v332
  %365 = vst [vmem:[%s2 + $0x78] sm:$0xff] %v333
  // Predicated region
  $region10: #{conditional_batchnorm2d_forward.2} parent=0 // pred_check
    _
  $region11: #{conditional_batchnorm2d_forward.2} parent=0 // pred_check_branch
    %367 = sbr.rel (0) target = $region13
  $region12: #{conditional_batchnorm2d_forward.2} parent=0 // pred_region
    _
  $region13: #{conditional_batchnorm2d_forward.2} parent=0 // pred_fallthru
    _
  // Predicated region
  $region14: #{conditional_batchnorm2d_forward.2} parent=0 // pred_check
    _
  $region15: #{conditional_batchnorm2d_forward.2} parent=0 // pred_check_branch
    %369 = sbr.rel (0) target = $region17
  $region16: #{conditional_batchnorm2d_forward.2} parent=0 // pred_region
    _
  $region17: #{conditional_batchnorm2d_forward.2} parent=0 // pred_fallthru
    _
  // Predicated region
  $region18: #{conditional_batchnorm2d_forward.2} parent=0 // pred_check
    _
  $region19: #{conditional_batchnorm2d_forward.2} parent=0 // pred_check_branch
    %371 = sbr.rel (0) target = $region21
  $region20: #{conditional_batchnorm2d_forward.2} parent=0 // pred_region
    _
  $region21: #{conditional_batchnorm2d_forward.2} parent=0 // pred_fallthru
    _
  // Predicated region
  $region22: #{conditional_batchnorm2d_forward.2} parent=0 // pred_check
    _
  $region23: #{conditional_batchnorm2d_forward.2} parent=0 // pred_check_branch
    %373 = sbr.rel (0) target = $region25
  $region24: #{conditional_batchnorm2d_forward.2} parent=0 // pred_region
    _
  $region25: #{conditional_batchnorm2d_forward.2} parent=0 // pred_fallthru
    _

// kernel: conditional_batchnorm2d_forward.3
$region0: #{conditional_batchnorm2d_forward.3}
  #allocation0 [shape = 'u32[]', space=smem, size = 0x4, offset = 0x4, fixed_abs, tag = 'smem constant byte address 0x4 - core index']
  #allocation1 [shape = 'u32[144,128]{1,0:T(1,128)}', space=vmem, size = 0x12000, scoped, tag = 'internal scratch']
  %s0 = inlined_call_operand.vmem [shape: f32[2,128,256], index: 0, kind: input, shape index: {}]
  %s1 = inlined_call_operand.vmem [shape: f32[2,128,1], index: 1, kind: input, shape index: {}]
  %s2 = inlined_call_operand.vmem [shape: f32[2,128,1], index: 2, kind: input, shape index: {}]
  %s3 = inlined_call_operand.vmem [shape: f32[2,128,256], index: 3, kind: output, shape index: {}]
  %s4 = sld [smem:[#allocation0]]
  $region22: #{conditional_batchnorm2d_forward.3} parent=0
    _
  %s6 = ssub.s32 1, %s4
  %s7 = scalar_select 0, %s6, %s4
  // Predicated region
  $region2: #{conditional_batchnorm2d_forward.3} parent=0 // pred_check
    _
  $region3: #{conditional_batchnorm2d_forward.3} parent=0 // pred_check_branch
    %9 = sbr.rel (0) target = $region5
  $region4: #{conditional_batchnorm2d_forward.3} parent=0 // pred_region
    _
  $region5: #{conditional_batchnorm2d_forward.3} parent=0 // pred_fallthru
    _
  // Predicated region
  $region6: #{conditional_batchnorm2d_forward.3} parent=0 // pred_check
    _
  $region7: #{conditional_batchnorm2d_forward.3} parent=0 // pred_check_branch
    %11 = sbr.rel (0) target = $region9
  $region8: #{conditional_batchnorm2d_forward.3} parent=0 // pred_region
    _
  $region9: #{conditional_batchnorm2d_forward.3} parent=0 // pred_fallthru
    _
  // Predicated region
  $region10: #{conditional_batchnorm2d_forward.3} parent=0 // pred_check
    _
  $region11: #{conditional_batchnorm2d_forward.3} parent=0 // pred_check_branch
    %13 = sbr.rel (0) target = $region13
  $region12: #{conditional_batchnorm2d_forward.3} parent=0 // pred_region
    _
  $region13: #{conditional_batchnorm2d_forward.3} parent=0 // pred_fallthru
    _
  %v14 = vld [vmem:[%s0] sm:$0xff]
  %v15 = vld [vmem:[%s0 + $0x8] sm:$0xff]
  %v16 = vld [vmem:[%s0 + $0x10] sm:$0xff]
  %v17 = vld [vmem:[%s0 + $0x18] sm:$0xff]
  %v18 = vld [vmem:[%s0 + $0x20] sm:$0xff]
  %v19 = vld [vmem:[%s0 + $0x28] sm:$0xff]
  %v20 = vld [vmem:[%s0 + $0x30] sm:$0xff]
  %v21 = vld [vmem:[%s0 + $0x38] sm:$0xff]
  %v22 = vld [vmem:[%s0 + $0x40] sm:$0xff]
  %v23 = vld [vmem:[%s0 + $0x48] sm:$0xff]
  %v24 = vld [vmem:[%s0 + $0x50] sm:$0xff]
  %v25 = vld [vmem:[%s0 + $0x58] sm:$0xff]
  %v26 = vld [vmem:[%s0 + $0x60] sm:$0xff]
  %v27 = vld [vmem:[%s0 + $0x68] sm:$0xff]
  %v28 = vld [vmem:[%s0 + $0x70] sm:$0xff]
  %v29 = vld [vmem:[%s0 + $0x78] sm:$0xff]
  %v30 = vld [vmem:[%s0 + $0x80] sm:$0xff]
  %v31 = vld [vmem:[%s0 + $0x88] sm:$0xff]
  %v32 = vld [vmem:[%s0 + $0x90] sm:$0xff]
  %v33 = vld [vmem:[%s0 + $0x98] sm:$0xff]
  %v34 = vld [vmem:[%s0 + $0xa0] sm:$0xff]
  %v35 = vld [vmem:[%s0 + $0xa8] sm:$0xff]
  %v36 = vld [vmem:[%s0 + $0xb0] sm:$0xff]
  %v37 = vld [vmem:[%s0 + $0xb8] sm:$0xff]
  %v38 = vld [vmem:[%s0 + $0xc0] sm:$0xff]
  %v39 = vld [vmem:[%s0 + $0xc8] sm:$0xff]
  %v40 = vld [vmem:[%s0 + $0xd0] sm:$0xff]
  %v41 = vld [vmem:[%s0 + $0xd8] sm:$0xff]
  %v42 = vld [vmem:[%s0 + $0xe0] sm:$0xff]
  %v43 = vld [vmem:[%s0 + $0xe8] sm:$0xff]
  %v44 = vld [vmem:[%s0 + $0xf0] sm:$0xff]
  %v45 = vld [vmem:[%s0 + $0xf8] sm:$0xff]
  %v46 = vld [vmem:[%s0 + $0x100] sm:$0xff]
  %v47 = vld [vmem:[%s0 + $0x108] sm:$0xff]
  %v48 = vld [vmem:[%s0 + $0x110] sm:$0xff]
  %v49 = vld [vmem:[%s0 + $0x118] sm:$0xff]
  %v50 = vld [vmem:[%s0 + $0x120] sm:$0xff]
  %v51 = vld [vmem:[%s0 + $0x128] sm:$0xff]
  %v52 = vld [vmem:[%s0 + $0x130] sm:$0xff]
  %v53 = vld [vmem:[%s0 + $0x138] sm:$0xff]
  %v54 = vld [vmem:[%s0 + $0x140] sm:$0xff]
  %v55 = vld [vmem:[%s0 + $0x148] sm:$0xff]
  %v56 = vld [vmem:[%s0 + $0x150] sm:$0xff]
  %v57 = vld [vmem:[%s0 + $0x158] sm:$0xff]
  %v58 = vld [vmem:[%s0 + $0x160] sm:$0xff]
  %v59 = vld [vmem:[%s0 + $0x168] sm:$0xff]
  %v60 = vld [vmem:[%s0 + $0x170] sm:$0xff]
  %v61 = vld [vmem:[%s0 + $0x178] sm:$0xff]
  %v62 = vld [vmem:[%s0 + $0x180] sm:$0xff]
  %v63 = vld [vmem:[%s0 + $0x188] sm:$0xff]
  %v64 = vld [vmem:[%s0 + $0x190] sm:$0xff]
  %v65 = vld [vmem:[%s0 + $0x198] sm:$0xff]
  %v66 = vld [vmem:[%s0 + $0x1a0] sm:$0xff]
  %v67 = vld [vmem:[%s0 + $0x1a8] sm:$0xff]
  %v68 = vld [vmem:[%s0 + $0x1b0] sm:$0xff]
  %v69 = vld [vmem:[%s0 + $0x1b8] sm:$0xff]
  %v70 = vld [vmem:[%s0 + $0x1c0] sm:$0xff]
  %v71 = vld [vmem:[%s0 + $0x1c8] sm:$0xff]
  %v72 = vld [vmem:[%s0 + $0x1d0] sm:$0xff]
  %v73 = vld [vmem:[%s0 + $0x1d8] sm:$0xff]
  %v74 = vld [vmem:[%s0 + $0x1e0] sm:$0xff]
  %v75 = vld [vmem:[%s0 + $0x1e8] sm:$0xff]
  %v76 = vld [vmem:[%s0 + $0x1f0] sm:$0xff]
  %v77 = vld [vmem:[%s0 + $0x1f8] sm:$0xff]
  %v78 = vld [vmem:[%s1] sm:$0xff]
  %v79 = vld [vmem:[%s1 + $0x8] sm:$0xff]
  %v80 = vld [vmem:[%s1 + $0x10] sm:$0xff]
  %v81 = vld [vmem:[%s1 + $0x18] sm:$0xff]
  %v82 = vld [vmem:[%s1 + $0x20] sm:$0xff]
  %v83 = vld [vmem:[%s1 + $0x28] sm:$0xff]
  %v84 = vld [vmem:[%s1 + $0x30] sm:$0xff]
  %v85 = vld [vmem:[%s1 + $0x38] sm:$0xff]
  %v86 = vld [vmem:[%s1 + $0x40] sm:$0xff]
  %v87 = vld [vmem:[%s1 + $0x48] sm:$0xff]
  %v88 = vld [vmem:[%s1 + $0x50] sm:$0xff]
  %v89 = vld [vmem:[%s1 + $0x58] sm:$0xff]
  %v90 = vld [vmem:[%s1 + $0x60] sm:$0xff]
  %v91 = vld [vmem:[%s1 + $0x68] sm:$0xff]
  %v92 = vld [vmem:[%s1 + $0x70] sm:$0xff]
  %v93 = vld [vmem:[%s1 + $0x78] sm:$0xff]
  %v94 = vld [vmem:[%s1 + $0x80] sm:$0xff]
  %v95 = vld [vmem:[%s1 + $0x88] sm:$0xff]
  %v96 = vld [vmem:[%s1 + $0x90] sm:$0xff]
  %v97 = vld [vmem:[%s1 + $0x98] sm:$0xff]
  %v98 = vld [vmem:[%s1 + $0xa0] sm:$0xff]
  %v99 = vld [vmem:[%s1 + $0xa8] sm:$0xff]
  %v100 = vld [vmem:[%s1 + $0xb0] sm:$0xff]
  %v101 = vld [vmem:[%s1 + $0xb8] sm:$0xff]
  %v102 = vld [vmem:[%s1 + $0xc0] sm:$0xff]
  %v103 = vld [vmem:[%s1 + $0xc8] sm:$0xff]
  %v104 = vld [vmem:[%s1 + $0xd0] sm:$0xff]
  %v105 = vld [vmem:[%s1 + $0xd8] sm:$0xff]
  %v106 = vld [vmem:[%s1 + $0xe0] sm:$0xff]
  %v107 = vld [vmem:[%s1 + $0xe8] sm:$0xff]
  %v108 = vld [vmem:[%s1 + $0xf0] sm:$0xff]
  %v109 = vld [vmem:[%s1 + $0xf8] sm:$0xff]
  %111 = vset.pattern.permute.xlu0 0
  %112 = vperm.xlu0 %111, %v78
  %v113 = vpop.permute.xlu0 %112
  %116 = vset.pattern.permute.xlu0 0
  %117 = vperm.xlu0 %116, %v79
  %v118 = vpop.permute.xlu0 %117
  %121 = vset.pattern.permute.xlu0 0
  %122 = vperm.xlu0 %121, %v80
  %v123 = vpop.permute.xlu0 %122
  %126 = vset.pattern.permute.xlu0 0
  %127 = vperm.xlu0 %126, %v81
  %v128 = vpop.permute.xlu0 %127
  %131 = vset.pattern.permute.xlu0 0
  %132 = vperm.xlu0 %131, %v82
  %v133 = vpop.permute.xlu0 %132
  %136 = vset.pattern.permute.xlu0 0
  %137 = vperm.xlu0 %136, %v83
  %v138 = vpop.permute.xlu0 %137
  %141 = vset.pattern.permute.xlu0 0
  %142 = vperm.xlu0 %141, %v84
  %v143 = vpop.permute.xlu0 %142
  %146 = vset.pattern.permute.xlu0 0
  %147 = vperm.xlu0 %146, %v85
  %v148 = vpop.permute.xlu0 %147
  %151 = vset.pattern.permute.xlu0 0
  %152 = vperm.xlu0 %151, %v86
  %v153 = vpop.permute.xlu0 %152
  %156 = vset.pattern.permute.xlu0 0
  %157 = vperm.xlu0 %156, %v87
  %v158 = vpop.permute.xlu0 %157
  %161 = vset.pattern.permute.xlu0 0
  %162 = vperm.xlu0 %161, %v88
  %v163 = vpop.permute.xlu0 %162
  %166 = vset.pattern.permute.xlu0 0
  %167 = vperm.xlu0 %166, %v89
  %v168 = vpop.permute.xlu0 %167
  %171 = vset.pattern.permute.xlu0 0
  %172 = vperm.xlu0 %171, %v90
  %v173 = vpop.permute.xlu0 %172
  %176 = vset.pattern.permute.xlu0 0
  %177 = vperm.xlu0 %176, %v91
  %v178 = vpop.permute.xlu0 %177
  %181 = vset.pattern.permute.xlu0 0
  %182 = vperm.xlu0 %181, %v92
  %v183 = vpop.permute.xlu0 %182
  %186 = vset.pattern.permute.xlu0 0
  %187 = vperm.xlu0 %186, %v93
  %v188 = vpop.permute.xlu0 %187
  %191 = vset.pattern.permute.xlu0 0
  %192 = vperm.xlu0 %191, %v94
  %v193 = vpop.permute.xlu0 %192
  %196 = vset.pattern.permute.xlu0 0
  %197 = vperm.xlu0 %196, %v95
  %v198 = vpop.permute.xlu0 %197
  %201 = vset.pattern.permute.xlu0 0
  %202 = vperm.xlu0 %201, %v96
  %v203 = vpop.permute.xlu0 %202
  %206 = vset.pattern.permute.xlu0 0
  %207 = vperm.xlu0 %206, %v97
  %v208 = vpop.permute.xlu0 %207
  %211 = vset.pattern.permute.xlu0 0
  %212 = vperm.xlu0 %211, %v98
  %v213 = vpop.permute.xlu0 %212
  %216 = vset.pattern.permute.xlu0 0
  %217 = vperm.xlu0 %216, %v99
  %v218 = vpop.permute.xlu0 %217
  %221 = vset.pattern.permute.xlu0 0
  %222 = vperm.xlu0 %221, %v100
  %v223 = vpop.permute.xlu0 %222
  %226 = vset.pattern.permute.xlu0 0
  %227 = vperm.xlu0 %226, %v101
  %v228 = vpop.permute.xlu0 %227
  %231 = vset.pattern.permute.xlu0 0
  %232 = vperm.xlu0 %231, %v102
  %v233 = vpop.permute.xlu0 %232
  %236 = vset.pattern.permute.xlu0 0
  %237 = vperm.xlu0 %236, %v103
  %v238 = vpop.permute.xlu0 %237
  %241 = vset.pattern.permute.xlu0 0
  %242 = vperm.xlu0 %241, %v104
  %v243 = vpop.permute.xlu0 %242
  %246 = vset.pattern.permute.xlu0 0
  %247 = vperm.xlu0 %246, %v105
  %v248 = vpop.permute.xlu0 %247
  %251 = vset.pattern.permute.xlu0 0
  %252 = vperm.xlu0 %251, %v106
  %v253 = vpop.permute.xlu0 %252
  %256 = vset.pattern.permute.xlu0 0
  %257 = vperm.xlu0 %256, %v107
  %v258 = vpop.permute.xlu0 %257
  %261 = vset.pattern.permute.xlu0 0
  %262 = vperm.xlu0 %261, %v108
  %v263 = vpop.permute.xlu0 %262
  %266 = vset.pattern.permute.xlu0 0
  %267 = vperm.xlu0 %266, %v109
  %v268 = vpop.permute.xlu0 %267
  %v270 = vmul.f32 %v14, %v113
  %v271 = vmul.f32 %v15, %v113
  %v272 = vmul.f32 %v16, %v118
  %v273 = vmul.f32 %v17, %v118
  %v274 = vmul.f32 %v18, %v123
  %v275 = vmul.f32 %v19, %v123
  %v276 = vmul.f32 %v20, %v128
  %v277 = vmul.f32 %v21, %v128
  %v278 = vmul.f32 %v22, %v133
  %v279 = vmul.f32 %v23, %v133
  %v280 = vmul.f32 %v24, %v138
  %v281 = vmul.f32 %v25, %v138
  %v282 = vmul.f32 %v26, %v143
  %v283 = vmul.f32 %v27, %v143
  %v284 = vmul.f32 %v28, %v148
  %v285 = vmul.f32 %v29, %v148
  %v286 = vmul.f32 %v30, %v153
  %v287 = vmul.f32 %v31, %v153
  %v288 = vmul.f32 %v32, %v158
  %v289 = vmul.f32 %v33, %v158
  %v290 = vmul.f32 %v34, %v163
  %v291 = vmul.f32 %v35, %v163
  %v292 = vmul.f32 %v36, %v168
  %v293 = vmul.f32 %v37, %v168
  %v294 = vmul.f32 %v38, %v173
  %v295 = vmul.f32 %v39, %v173
  %v296 = vmul.f32 %v40, %v178
  %v297 = vmul.f32 %v41, %v178
  %v298 = vmul.f32 %v42, %v183
  %v299 = vmul.f32 %v43, %v183
  %v300 = vmul.f32 %v44, %v188
  %v301 = vmul.f32 %v45, %v188
  %v302 = vmul.f32 %v46, %v193
  %v303 = vmul.f32 %v47, %v193
  %v304 = vmul.f32 %v48, %v198
  %v305 = vmul.f32 %v49, %v198
  %v306 = vmul.f32 %v50, %v203
  %v307 = vmul.f32 %v51, %v203
  %v308 = vmul.f32 %v52, %v208
  %v309 = vmul.f32 %v53, %v208
  %v310 = vmul.f32 %v54, %v213
  %v311 = vmul.f32 %v55, %v213
  %v312 = vmul.f32 %v56, %v218
  %v313 = vmul.f32 %v57, %v218
  %v314 = vmul.f32 %v58, %v223
  %v315 = vmul.f32 %v59, %v223
  %v316 = vmul.f32 %v60, %v228
  %v317 = vmul.f32 %v61, %v228
  %v318 = vmul.f32 %v62, %v233
  %v319 = vmul.f32 %v63, %v233
  %v320 = vmul.f32 %v64, %v238
  %v321 = vmul.f32 %v65, %v238
  %v322 = vmul.f32 %v66, %v243
  %v323 = vmul.f32 %v67, %v243
  %v324 = vmul.f32 %v68, %v248
  %v325 = vmul.f32 %v69, %v248
  %v326 = vmul.f32 %v70, %v253
  %v327 = vmul.f32 %v71, %v253
  %v328 = vmul.f32 %v72, %v258
  %v329 = vmul.f32 %v73, %v258
  %v330 = vmul.f32 %v74, %v263
  %v331 = vmul.f32 %v75, %v263
  %v332 = vmul.f32 %v76, %v268
  %v333 = vmul.f32 %v77, %v268
  %v334 = vld [vmem:[%s2] sm:$0xff]
  %v335 = vld [vmem:[%s2 + $0x8] sm:$0xff]
  %v336 = vld [vmem:[%s2 + $0x10] sm:$0xff]
  %v337 = vld [vmem:[%s2 + $0x18] sm:$0xff]
  %v338 = vld [vmem:[%s2 + $0x20] sm:$0xff]
  %v339 = vld [vmem:[%s2 + $0x28] sm:$0xff]
  %v340 = vld [vmem:[%s2 + $0x30] sm:$0xff]
  %v341 = vld [vmem:[%s2 + $0x38] sm:$0xff]
  %v342 = vld [vmem:[%s2 + $0x40] sm:$0xff]
  %v343 = vld [vmem:[%s2 + $0x48] sm:$0xff]
  %v344 = vld [vmem:[%s2 + $0x50] sm:$0xff]
  %v345 = vld [vmem:[%s2 + $0x58] sm:$0xff]
  %v346 = vld [vmem:[%s2 + $0x60] sm:$0xff]
  %v347 = vld [vmem:[%s2 + $0x68] sm:$0xff]
  %v348 = vld [vmem:[%s2 + $0x70] sm:$0xff]
  %v349 = vld [vmem:[%s2 + $0x78] sm:$0xff]
  %v350 = vld [vmem:[%s2 + $0x80] sm:$0xff]
  %v351 = vld [vmem:[%s2 + $0x88] sm:$0xff]
  %v352 = vld [vmem:[%s2 + $0x90] sm:$0xff]
  %v353 = vld [vmem:[%s2 + $0x98] sm:$0xff]
  %v354 = vld [vmem:[%s2 + $0xa0] sm:$0xff]
  %v355 = vld [vmem:[%s2 + $0xa8] sm:$0xff]
  %v356 = vld [vmem:[%s2 + $0xb0] sm:$0xff]
  %v357 = vld [vmem:[%s2 + $0xb8] sm:$0xff]
  %v358 = vld [vmem:[%s2 + $0xc0] sm:$0xff]
  %v359 = vld [vmem:[%s2 + $0xc8] sm:$0xff]
  %v360 = vld [vmem:[%s2 + $0xd0] sm:$0xff]
  %v361 = vld [vmem:[%s2 + $0xd8] sm:$0xff]
  %v362 = vld [vmem:[%s2 + $0xe0] sm:$0xff]
  %v363 = vld [vmem:[%s2 + $0xe8] sm:$0xff]
  %v364 = vld [vmem:[%s2 + $0xf0] sm:$0xff]
  %v365 = vld [vmem:[%s2 + $0xf8] sm:$0xff]
  %367 = vset.pattern.permute.xlu0 0
  %368 = vperm.xlu0 %367, %v334
  %v369 = vpop.permute.xlu0 %368
  %372 = vset.pattern.permute.xlu0 0
  %373 = vperm.xlu0 %372, %v335
  %v374 = vpop.permute.xlu0 %373
  %377 = vset.pattern.permute.xlu0 0
  %378 = vperm.xlu0 %377, %v336
  %v379 = vpop.permute.xlu0 %378
  %382 = vset.pattern.permute.xlu0 0
  %383 = vperm.xlu0 %382, %v337
  %v384 = vpop.permute.xlu0 %383
  %387 = vset.pattern.permute.xlu0 0
  %388 = vperm.xlu0 %387, %v338
  %v389 = vpop.permute.xlu0 %388
  %392 = vset.pattern.permute.xlu0 0
  %393 = vperm.xlu0 %392, %v339
  %v394 = vpop.permute.xlu0 %393
  %397 = vset.pattern.permute.xlu0 0
  %398 = vperm.xlu0 %397, %v340
  %v399 = vpop.permute.xlu0 %398
  %402 = vset.pattern.permute.xlu0 0
  %403 = vperm.xlu0 %402, %v341
  %v404 = vpop.permute.xlu0 %403
  %407 = vset.pattern.permute.xlu0 0
  %408 = vperm.xlu0 %407, %v342
  %v409 = vpop.permute.xlu0 %408
  %412 = vset.pattern.permute.xlu0 0
  %413 = vperm.xlu0 %412, %v343
  %v414 = vpop.permute.xlu0 %413
  %417 = vset.pattern.permute.xlu0 0
  %418 = vperm.xlu0 %417, %v344
  %v419 = vpop.permute.xlu0 %418
  %422 = vset.pattern.permute.xlu0 0
  %423 = vperm.xlu0 %422, %v345
  %v424 = vpop.permute.xlu0 %423
  %427 = vset.pattern.permute.xlu0 0
  %428 = vperm.xlu0 %427, %v346
  %v429 = vpop.permute.xlu0 %428
  %432 = vset.pattern.permute.xlu0 0
  %433 = vperm.xlu0 %432, %v347
  %v434 = vpop.permute.xlu0 %433
  %437 = vset.pattern.permute.xlu0 0
  %438 = vperm.xlu0 %437, %v348
  %v439 = vpop.permute.xlu0 %438
  %442 = vset.pattern.permute.xlu0 0
  %443 = vperm.xlu0 %442, %v349
  %v444 = vpop.permute.xlu0 %443
  %447 = vset.pattern.permute.xlu0 0
  %448 = vperm.xlu0 %447, %v350
  %v449 = vpop.permute.xlu0 %448
  %452 = vset.pattern.permute.xlu0 0
  %453 = vperm.xlu0 %452, %v351
  %v454 = vpop.permute.xlu0 %453
  %457 = vset.pattern.permute.xlu0 0
  %458 = vperm.xlu0 %457, %v352
  %v459 = vpop.permute.xlu0 %458
  %462 = vset.pattern.permute.xlu0 0
  %463 = vperm.xlu0 %462, %v353
  %v464 = vpop.permute.xlu0 %463
  %467 = vset.pattern.permute.xlu0 0
  %468 = vperm.xlu0 %467, %v354
  %v469 = vpop.permute.xlu0 %468
  %472 = vset.pattern.permute.xlu0 0
  %473 = vperm.xlu0 %472, %v355
  %v474 = vpop.permute.xlu0 %473
  %477 = vset.pattern.permute.xlu0 0
  %478 = vperm.xlu0 %477, %v356
  %v479 = vpop.permute.xlu0 %478
  %482 = vset.pattern.permute.xlu0 0
  %483 = vperm.xlu0 %482, %v357
  %v484 = vpop.permute.xlu0 %483
  %487 = vset.pattern.permute.xlu0 0
  %488 = vperm.xlu0 %487, %v358
  %v489 = vpop.permute.xlu0 %488
  %492 = vset.pattern.permute.xlu0 0
  %493 = vperm.xlu0 %492, %v359
  %v494 = vpop.permute.xlu0 %493
  %497 = vset.pattern.permute.xlu0 0
  %498 = vperm.xlu0 %497, %v360
  %v499 = vpop.permute.xlu0 %498
  %502 = vset.pattern.permute.xlu0 0
  %503 = vperm.xlu0 %502, %v361
  %v504 = vpop.permute.xlu0 %503
  %507 = vset.pattern.permute.xlu0 0
  %508 = vperm.xlu0 %507, %v362
  %v509 = vpop.permute.xlu0 %508
  %512 = vset.pattern.permute.xlu0 0
  %513 = vperm.xlu0 %512, %v363
  %v514 = vpop.permute.xlu0 %513
  %517 = vset.pattern.permute.xlu0 0
  %518 = vperm.xlu0 %517, %v364
  %v519 = vpop.permute.xlu0 %518
  %522 = vset.pattern.permute.xlu0 0
  %523 = vperm.xlu0 %522, %v365
  %v524 = vpop.permute.xlu0 %523
  %v526 = vadd.f32 %v270, %v369
  %v527 = vadd.f32 %v271, %v369
  %v528 = vadd.f32 %v272, %v374
  %v529 = vadd.f32 %v273, %v374
  %v530 = vadd.f32 %v274, %v379
  %v531 = vadd.f32 %v275, %v379
  %v532 = vadd.f32 %v276, %v384
  %v533 = vadd.f32 %v277, %v384
  %v534 = vadd.f32 %v278, %v389
  %v535 = vadd.f32 %v279, %v389
  %v536 = vadd.f32 %v280, %v394
  %v537 = vadd.f32 %v281, %v394
  %v538 = vadd.f32 %v282, %v399
  %v539 = vadd.f32 %v283, %v399
  %v540 = vadd.f32 %v284, %v404
  %v541 = vadd.f32 %v285, %v404
  %v542 = vadd.f32 %v286, %v409
  %v543 = vadd.f32 %v287, %v409
  %v544 = vadd.f32 %v288, %v414
  %v545 = vadd.f32 %v289, %v414
  %v546 = vadd.f32 %v290, %v419
  %v547 = vadd.f32 %v291, %v419
  %v548 = vadd.f32 %v292, %v424
  %v549 = vadd.f32 %v293, %v424
  %v550 = vadd.f32 %v294, %v429
  %v551 = vadd.f32 %v295, %v429
  %v552 = vadd.f32 %v296, %v434
  %v553 = vadd.f32 %v297, %v434
  %v554 = vadd.f32 %v298, %v439
  %v555 = vadd.f32 %v299, %v439
  %v556 = vadd.f32 %v300, %v444
  %v557 = vadd.f32 %v301, %v444
  %v558 = vadd.f32 %v302, %v449
  %v559 = vadd.f32 %v303, %v449
  %v560 = vadd.f32 %v304, %v454
  %v561 = vadd.f32 %v305, %v454
  %v562 = vadd.f32 %v306, %v459
  %v563 = vadd.f32 %v307, %v459
  %v564 = vadd.f32 %v308, %v464
  %v565 = vadd.f32 %v309, %v464
  %v566 = vadd.f32 %v310, %v469
  %v567 = vadd.f32 %v311, %v469
  %v568 = vadd.f32 %v312, %v474
  %v569 = vadd.f32 %v313, %v474
  %v570 = vadd.f32 %v314, %v479
  %v571 = vadd.f32 %v315, %v479
  %v572 = vadd.f32 %v316, %v484
  %v573 = vadd.f32 %v317, %v484
  %v574 = vadd.f32 %v318, %v489
  %v575 = vadd.f32 %v319, %v489
  %v576 = vadd.f32 %v320, %v494
  %v577 = vadd.f32 %v321, %v494
  %v578 = vadd.f32 %v322, %v499
  %v579 = vadd.f32 %v323, %v499
  %v580 = vadd.f32 %v324, %v504
  %v581 = vadd.f32 %v325, %v504
  %v582 = vadd.f32 %v326, %v509
  %v583 = vadd.f32 %v327, %v509
  %v584 = vadd.f32 %v328, %v514
  %v585 = vadd.f32 %v329, %v514
  %v586 = vadd.f32 %v330, %v519
  %v587 = vadd.f32 %v331, %v519
  %v588 = vadd.f32 %v332, %v524
  %v589 = vadd.f32 %v333, %v524
  %590 = vst [vmem:[%s3] sm:$0xff] %v526
  %591 = vst [vmem:[%s3 + $0x8] sm:$0xff] %v527
  %592 = vst [vmem:[%s3 + $0x10] sm:$0xff] %v528
  %593 = vst [vmem:[%s3 + $0x18] sm:$0xff] %v529
  %594 = vst [vmem:[%s3 + $0x20] sm:$0xff] %v530
  %595 = vst [vmem:[%s3 + $0x28] sm:$0xff] %v531
  %596 = vst [vmem:[%s3 + $0x30] sm:$0xff] %v532
  %597 = vst [vmem:[%s3 + $0x38] sm:$0xff] %v533
  %598 = vst [vmem:[%s3 + $0x40] sm:$0xff] %v534
  %599 = vst [vmem:[%s3 + $0x48] sm:$0xff] %v535
  %600 = vst [vmem:[%s3 + $0x50] sm:$0xff] %v536
  %601 = vst [vmem:[%s3 + $0x58] sm:$0xff] %v537
  %602 = vst [vmem:[%s3 + $0x60] sm:$0xff] %v538
  %603 = vst [vmem:[%s3 + $0x68] sm:$0xff] %v539
  %604 = vst [vmem:[%s3 + $0x70] sm:$0xff] %v540
  %605 = vst [vmem:[%s3 + $0x78] sm:$0xff] %v541
  %606 = vst [vmem:[%s3 + $0x80] sm:$0xff] %v542
  %607 = vst [vmem:[%s3 + $0x88] sm:$0xff] %v543
  %608 = vst [vmem:[%s3 + $0x90] sm:$0xff] %v544
  %609 = vst [vmem:[%s3 + $0x98] sm:$0xff] %v545
  %610 = vst [vmem:[%s3 + $0xa0] sm:$0xff] %v546
  %611 = vst [vmem:[%s3 + $0xa8] sm:$0xff] %v547
  %612 = vst [vmem:[%s3 + $0xb0] sm:$0xff] %v548
  %613 = vst [vmem:[%s3 + $0xb8] sm:$0xff] %v549
  %614 = vst [vmem:[%s3 + $0xc0] sm:$0xff] %v550
  %615 = vst [vmem:[%s3 + $0xc8] sm:$0xff] %v551
  %616 = vst [vmem:[%s3 + $0xd0] sm:$0xff] %v552
  %617 = vst [vmem:[%s3 + $0xd8] sm:$0xff] %v553
  %618 = vst [vmem:[%s3 + $0xe0] sm:$0xff] %v554
  %619 = vst [vmem:[%s3 + $0xe8] sm:$0xff] %v555
  %620 = vst [vmem:[%s3 + $0xf0] sm:$0xff] %v556
  %621 = vst [vmem:[%s3 + $0xf8] sm:$0xff] %v557
  %622 = vst [vmem:[%s3 + $0x100] sm:$0xff] %v558
  %623 = vst [vmem:[%s3 + $0x108] sm:$0xff] %v559
  %624 = vst [vmem:[%s3 + $0x110] sm:$0xff] %v560
  %625 = vst [vmem:[%s3 + $0x118] sm:$0xff] %v561
  %626 = vst [vmem:[%s3 + $0x120] sm:$0xff] %v562
  %627 = vst [vmem:[%s3 + $0x128] sm:$0xff] %v563
  %628 = vst [vmem:[%s3 + $0x130] sm:$0xff] %v564
  %629 = vst [vmem:[%s3 + $0x138] sm:$0xff] %v565
  %630 = vst [vmem:[%s3 + $0x140] sm:$0xff] %v566
  %631 = vst [vmem:[%s3 + $0x148] sm:$0xff] %v567
  %632 = vst [vmem:[%s3 + $0x150] sm:$0xff] %v568
  %633 = vst [vmem:[%s3 + $0x158] sm:$0xff] %v569
  %634 = vst [vmem:[%s3 + $0x160] sm:$0xff] %v570
  %635 = vst [vmem:[%s3 + $0x168] sm:$0xff] %v571
  %636 = vst [vmem:[%s3 + $0x170] sm:$0xff] %v572
  %637 = vst [vmem:[%s3 + $0x178] sm:$0xff] %v573
  %638 = vst [vmem:[%s3 + $0x180] sm:$0xff] %v574
  %639 = vst [vmem:[%s3 + $0x188] sm:$0xff] %v575
  %640 = vst [vmem:[%s3 + $0x190] sm:$0xff] %v576
  %641 = vst [vmem:[%s3 + $0x198] sm:$0xff] %v577
  %642 = vst [vmem:[%s3 + $0x1a0] sm:$0xff] %v578
  %643 = vst [vmem:[%s3 + $0x1a8] sm:$0xff] %v579
  %644 = vst [vmem:[%s3 + $0x1b0] sm:$0xff] %v580
  %645 = vst [vmem:[%s3 + $0x1b8] sm:$0xff] %v581
  %646 = vst [vmem:[%s3 + $0x1c0] sm:$0xff] %v582
  %647 = vst [vmem:[%s3 + $0x1c8] sm:$0xff] %v583
  %648 = vst [vmem:[%s3 + $0x1d0] sm:$0xff] %v584
  %649 = vst [vmem:[%s3 + $0x1d8] sm:$0xff] %v585
  %650 = vst [vmem:[%s3 + $0x1e0] sm:$0xff] %v586
  %651 = vst [vmem:[%s3 + $0x1e8] sm:$0xff] %v587
  %652 = vst [vmem:[%s3 + $0x1f0] sm:$0xff] %v588
  %653 = vst [vmem:[%s3 + $0x1f8] sm:$0xff] %v589
  // Predicated region
  $region14: #{conditional_batchnorm2d_forward.3} parent=0 // pred_check
    _
  $region15: #{conditional_batchnorm2d_forward.3} parent=0 // pred_check_branch
    %655 = sbr.rel (0) target = $region17
  $region16: #{conditional_batchnorm2d_forward.3} parent=0 // pred_region
    _
  $region17: #{conditional_batchnorm2d_forward.3} parent=0 // pred_fallthru
    _
  // Predicated region
  $region18: #{conditional_batchnorm2d_forward.3} parent=0 // pred_check
    _
  $region19: #{conditional_batchnorm2d_forward.3} parent=0 // pred_check_branch
    %657 = sbr.rel (0) target = $region21
  $region20: #{conditional_batchnorm2d_forward.3} parent=0 // pred_region
    _
  $region21: #{conditional_batchnorm2d_forward.3} parent=0 // pred_fallthru
    _

</llo_original>
